<compile_context>
chip_gen: v5e
topology: v5e:2x2
jax: 0.10.0
libtpu: 0.0.40
codegen_flags: <defaults>
</compile_context>

<pallas_src>
import jax
import jax.numpy as jnp
import numpy as np
from jax import lax
from jax.experimental import pallas as pl
from jax.experimental.pallas import tpu as pltpu

K = 3  # kernel_size == stride == 3, padding = 0, ceil_mode = False


def _round_up(a, b):
    return (a + b - 1) // b * b


def _maxpool_kernel(x_ref, o_ref):
    # x_ref: (nc_blk, rows_blk, W)  raw NCHW rows, W on the 128-lane axis.
    # o_ref: (nc_blk, ho_blk, Wo)
    nc_blk, ho_blk, wo = o_ref.shape
    w = x_ref.shape[-1]
    win = w - (K - 1)                     # window-max positions along W

    # 0/1 lane-decimation matrix: column j selects lane 3*j.  Built once per
    # grid step from 2-D iotas (hoisted out of the per-plane loop).
    rows = lax.broadcasted_iota(jnp.int32, (win, wo), 0)
    cols = lax.broadcasted_iota(jnp.int32, (win, wo), 1)
    sel = (rows == K * cols).astype(x_ref.dtype)

    def plane(i, carry):
        # --- H window + stride-3 row decimation (strided sublane reads) ----
        r0 = x_ref[i, pl.ds(0, ho_blk, K), :]          # rows 0,3,6,...
        r1 = x_ref[i, pl.ds(1, ho_blk, K), :]          # rows 1,4,7,...
        r2 = x_ref[i, pl.ds(2, ho_blk, K), :]          # rows 2,5,8,...
        hmax = jnp.maximum(jnp.maximum(r0, r1), r2)    # (ho_blk, W)

        # --- W window via lane-shifted static slices (VPU max) -------------
        wmax = jnp.maximum(
            jnp.maximum(hmax[:, 0:win], hmax[:, 1:win + 1]),
            hmax[:, 2:win + 2])                        # (ho_blk, win); col 3*j holds output j

        # --- stride-3 lane decimation: exact 0/1 selection matmul on MXU ---
        out = jnp.dot(wmax, sel,
                      precision=lax.Precision.HIGHEST,
                      preferred_element_type=jnp.float32)   # (ho_blk, Wo)
        o_ref[i, :, :] = out.astype(o_ref.dtype)
        return carry

    lax.fori_loop(0, nc_blk, plane, 0)


@jax.jit
def lcj_maxpool(x):
    n, c, h, w = x.shape
    ho = (h - K) // K + 1
    wo = (w - K) // K + 1
    nc = n * c

    # Metadata-only views: no HBM copies on either side of the kernel.
    xr = x.reshape(nc, h, w)

    # --- block sizing (dtype-correct padded-VMEM estimate) -----------------
    itemsize = jnp.dtype(x.dtype).itemsize
    sub = {4: 8, 2: 16, 1: 32}.get(itemsize, 8)        # min sublane tile per dtype

    def padded_bytes(lead, rows, lanes):
        return lead * _round_up(rows, sub) * _round_up(lanes, 128) * itemsize

    # Conservative per-input-buffer budget: double-buffered inputs + outputs
    # stay well under v5e's 16 MiB default scoped-VMEM limit (and v7x's VMEM).
    budget = 3 * 1024 * 1024
    plane_bytes = padded_bytes(1, h, w)
    if plane_bytes <= budget:
        rows_blk = h                                   # full H dim -> tiling rule OK
        ho_blk = ho
        nc_blk = int(max(1, min(nc, budget // plane_bytes)))
    else:
        # Very large planes: block output rows in multiples of 8 (3*ho_blk rows).
        nc_blk = 1
        ho_blk = max(8, (ho // 8) * 8)
        while ho_blk > 8 and padded_bytes(1, K * ho_blk, w) > budget:
            ho_blk -= 8
        ho_blk = min(ho_blk, _round_up(ho, 8))
        rows_blk = K * ho_blk

    # Guarantee >=2 grid steps (when possible) so both v7x TensorCores get work.
    if pl.cdiv(nc, nc_blk) * pl.cdiv(ho, ho_blk) == 1 and nc >= 2:
        nc_blk = (nc + 1) // 2

    grid = (pl.cdiv(nc, nc_blk), pl.cdiv(ho, ho_blk))

    out = pl.pallas_call(
        _maxpool_kernel,
        out_shape=jax.ShapeDtypeStruct((nc, ho, wo), x.dtype),
        grid=grid,
        in_specs=[pl.BlockSpec((nc_blk, rows_blk, w),
                               lambda ic, ih: (ic, ih, 0))],
        out_specs=pl.BlockSpec((nc_blk, ho_blk, wo),
                               lambda ic, ih: (ic, ih, 0)),
        compiler_params=pltpu.CompilerParams(
            dimension_semantics=("parallel", "parallel")),
    )(xr)

    return out.reshape(n, c, ho, wo)


if __name__ == "__main__":
    key = jax.random.PRNGKey(0)
    x = jax.random.normal(key, (2, 4, 16, 16), dtype=jnp.float32)

    out = jax.block_until_ready(lcj_maxpool(x))

    # Reference (plain JAX): identical semantics to nn.MaxPool2d(3).
    ref = lax.reduce_window(
        x, -jnp.inf, lax.max,
        window_dimensions=(1, 1, K, K),
        window_strides=(1, 1, K, K),
        padding="VALID",
    )
    assert out.shape == ref.shape == (2, 4, 5, 5), out.shape
    np.testing.assert_allclose(np.asarray(out), np.asarray(ref),
                               rtol=1e-6, atol=1e-6)
    print("KERNEL_OK")
</pallas_src>

<mosaic_0001>
module attributes {stable_mosaic.version = 11 : i64} {
  func.func @_maxpool_kernel(%arg0: i32, %arg1: i32, %arg2: memref<4x16x16xf32, #tpu.memory_space<vmem>>, %arg3: memref<4x5x5xf32, #tpu.memory_space<vmem>>) attributes {dimension_semantics = [#tpu.dimension_semantics<parallel>, #tpu.dimension_semantics<parallel>], iteration_bounds = array<i64: 2, 1>, scalar_prefetch = 0 : i64, scratch_operands = 0 : i64, tpu.core_type = #tpu.core_type<tc>, window_params = [{transform_indices = @transform_0, window_bounds = array<i64: 4, 16, 16>}, {transform_indices = @transform_1, window_bounds = array<i64: 4, 5, 5>}]} {
    %0 = tpu.iota {dimensions = array<i32: 0>} : vector<14x5xi32>
    %1 = tpu.iota {dimensions = array<i32: 1>} : vector<14x5xi32>
    %c3_i32 = arith.constant 3 : i32
    %2 = vector.broadcast %c3_i32 : i32 to vector<14x5xi32>
    %3 = arith.muli %2, %1 : vector<14x5xi32>
    %4 = arith.cmpi eq, %0, %3 : vector<14x5xi32>
    %5 = arith.extui %4 : vector<14x5xi1> to vector<14x5xi32>
    %6 = arith.sitofp %5 : vector<14x5xi32> to vector<14x5xf32>
    %c0_i32 = arith.constant 0 : i32
    %c4_i32 = arith.constant 4 : i32
    %7 = arith.addi %c0_i32, %c4_i32 : i32
    %c1_i32 = arith.constant 1 : i32
    scf.for %arg4 = %c0_i32 to %7 step %c1_i32  : i32 {
      %8 = arith.index_cast %arg4 : i32 to index
      %c0 = arith.constant 0 : index
      %c0_1 = arith.constant 0 : index
      %9 = tpu.strided_load %arg2[%8, %c0, %c0_1] {strides = array<i32: 1, 3, 1>} : memref<4x16x16xf32, #tpu.memory_space<vmem>>, vector<1x5x16xf32>
      %10 = vector.shape_cast %9 : vector<1x5x16xf32> to vector<5x16xf32>
      %11 = arith.index_cast %arg4 : i32 to index
      %c1 = arith.constant 1 : index
      %c0_2 = arith.constant 0 : index
      %12 = tpu.strided_load %arg2[%11, %c1, %c0_2] {strides = array<i32: 1, 3, 1>} : memref<4x16x16xf32, #tpu.memory_space<vmem>>, vector<1x5x16xf32>
      %13 = vector.shape_cast %12 : vector<1x5x16xf32> to vector<5x16xf32>
      %14 = arith.index_cast %arg4 : i32 to index
      %c2 = arith.constant 2 : index
      %c0_3 = arith.constant 0 : index
      %15 = tpu.strided_load %arg2[%14, %c2, %c0_3] {strides = array<i32: 1, 3, 1>} : memref<4x16x16xf32, #tpu.memory_space<vmem>>, vector<1x5x16xf32>
      %16 = vector.shape_cast %15 : vector<1x5x16xf32> to vector<5x16xf32>
      %17 = arith.maximumf %10, %13 : vector<5x16xf32>
      %18 = arith.maximumf %17, %16 : vector<5x16xf32>
      %19 = vector.extract_strided_slice %18 {offsets = [0, 0], sizes = [5, 14], strides = [1, 1]} : vector<5x16xf32> to vector<5x14xf32>
      %20 = vector.extract_strided_slice %18 {offsets = [0, 1], sizes = [5, 14], strides = [1, 1]} : vector<5x16xf32> to vector<5x14xf32>
      %21 = arith.maximumf %19, %20 : vector<5x14xf32>
      %22 = vector.extract_strided_slice %18 {offsets = [0, 2], sizes = [5, 14], strides = [1, 1]} : vector<5x16xf32> to vector<5x14xf32>
      %23 = arith.maximumf %21, %22 : vector<5x14xf32>
      %cst = arith.constant dense<0.000000e+00> : vector<5x5xf32>
      %24 = tpu.matmul %23, %6, %cst {dimension_numbers = #tpu.dot_dimension_numbers<[1], [0], [0], [1], [0, 0, 1, 1], [], []>, precision = #tpu.contract_precision<fp32>} : vector<5x14xf32>, vector<14x5xf32>, vector<5x5xf32> -> vector<5x5xf32>
      %25 = arith.index_cast %arg4 : i32 to index
      %c0_4 = arith.constant 0 : index
      %c0_5 = arith.constant 0 : index
      %26 = vector.load %arg3[%25, %c0_4, %c0_5] : memref<4x5x5xf32, #tpu.memory_space<vmem>>, vector<1x5x5xf32>
      %27 = vector.shape_cast %26 : vector<1x5x5xf32> to vector<5x5xf32>
      %28 = vector.shape_cast %24 : vector<5x5xf32> to vector<1x5x5xf32>
      tpu.vector_store %arg3[%25, %c0_4, %c0_5], %28 {strides = array<i32>} : memref<4x5x5xf32, #tpu.memory_space<vmem>>, vector<1x5x5xf32>,
    }
    %c4_i32_0 = arith.constant 4 : i32
    return
  }
  func.func @transform_0(%arg0: i32, %arg1: i32) -> (i32, i32, i32) {
    %c0_i32 = arith.constant 0 : i32
    %c0_i32_0 = arith.constant 0 : i32
    return %arg0, %arg1, %c0_i32 : i32, i32, i32
  }
  func.func @transform_1(%arg0: i32, %arg1: i32) -> (i32, i32, i32) {
    %c0_i32 = arith.constant 0 : i32
    %c0_i32_0 = arith.constant 0 : i32
    return %arg0, %arg1, %c0_i32 : i32, i32, i32
  }
}

</mosaic_0001>

<llo_original>
// kernel: lcj_maxpool.1
$region0: #{lcj_maxpool.1}
  #allocation0 [shape = 'u32[]', space=smem, size = 0x4, offset = 0x4, fixed_abs, tag = 'smem constant byte address 0x4 - core index']
  #allocation1 [shape = 'u32[72,128]{1,0:T(1,128)}', space=vmem, size = 0x9000, scoped, tag = 'internal scratch']
  %s0 = inlined_call_operand.hbm [shape: f32[8,16,16], index: 0, kind: input, shape index: {}]
  %s1 = inlined_call_operand.vmem [shape: f32[8,5,5], index: 1, kind: output, shape index: {}]
  %s2 = sld [smem:[#allocation0]]
  $region48: #{lcj_maxpool.1} parent=0
    _
  %s4 = ssub.s32 1, %s2
  %s5 = scalar_select 0, %s4, %s2
  $region1: #{lcj_maxpool.1} parent=0
    #allocation2 [shape = 'u8[65536]{0}', space=vmem, size = 0x10000, scoped, tag = 'input window, operand 0']
    #allocation3 [shape = 's32[2]{0}', space=sflag, size = 0x8, scoped, tag = 'scoped memory for lcj_maxpool.1']
    %6 = vsyncpa [#allocation3], 0
    %s7 = scalar_lea.sflag [#allocation3], 1
    %8 = vsyncpa %s7, 0
    loop: start=0, step=1, limit=4
    $region2: #{lcj_maxpool.1} parent=1 // loop_pre_header
      _
    $region3: #{lcj_maxpool.1} parent=1 // loop_header
      %s10 = sphi 0, %s14
      %p11 = scmp.ge.s32.totalorder %s10, 4
      %s17 = sphi 0, %s29
      %s18 = sphi 0, %s25
      %s19 = sphi 0, %s17
      %s20 = sphi 0, %s18
      %s21 = sphi 0, %s19
      %s22 = sphi 0, %s20
      %s34 = sphi 0, %s36
      %s37 = sphi 0, %s34
      %s38 = sphi 0, %s37
      %s54 = sphi 0, %s38
      %s62 = sphi 0, %s64
      %s65 = sphi 0, %s62
      %s66 = sphi 0, %s65
      %s82 = sphi 0, %s66
    $region4: #{lcj_maxpool.1} parent=1 // loop_header_branch
      %13 = sbr.rel (%p11) target = $region8
    $region5: #{lcj_maxpool.1} parent=1 // loop_body
      %s15 = ssub.s32 %s10, 1
      %s16 = ssub.s32 %s10, 2
      %s23 = sadd.s32 1, %s18
      %p24 = scmp.ge.s32.totalorder %s23, 1
      %s25 = scalar_select %p24, 0, %s23
      %s26 = sadd.s32 1, %s17
      %s27 = scalar_select %p24, %s26, %s17
      %p28 = scmp.ge.s32.totalorder %s27, 2
      %s29 = scalar_select %p28, 0, %s27
      %s30 = ssub.s32 %s17, %s29
      %s31 = ssub.s32 %s18, %s25
      %s32 = sor.u32 %s30, %s31
      %p33 = scmp.eq.s32.totalorder %s32, 0
      %s35 = sadd.s32 %s34, 1
      %s36 = scalar_select %p33, %s34, %s35
      %p39 = pneg %p33
      %p40 = scmp.eq.s32.totalorder %s10, 1
      %p41 = por %p39, %p40
      %p42 = scmp.ne.s32.totalorder %s34, %s37
      %p43 = scmp.eq.s32.totalorder %s10, 0
      %p44 = por %p42, %p43
      %p45 = scmp.ne.s32.totalorder %s34, %s37
      %p46 = scmp.eq.s32.totalorder %s15, 1
      %p47 = por %p45, %p46
      %p48 = scmp.ne.s32.totalorder %s37, %s38
      %p49 = scmp.eq.s32.totalorder %s15, 0
      %p50 = por %p48, %p49
      %p51 = scmp.ne.s32.totalorder %s37, %s38
      %p52 = scmp.eq.s32.totalorder %s16, 1
      %p53 = por %p51, %p52
      %p55 = scmp.ne.s32.totalorder %s38, %s54
      %p56 = scmp.eq.s32.totalorder %s16, 0
      %p57 = por %p55, %p56
      %s58 = ssub.s32 %s17, %s29
      %s59 = ssub.s32 %s18, %s25
      %s60 = sor.u32 %s58, %s59
      %p61 = scmp.eq.s32.totalorder %s60, 0
      %s63 = sadd.s32 %s62, 1
      %s64 = scalar_select %p61, %s62, %s63
      %p67 = pneg %p61
      %p68 = scmp.eq.s32.totalorder %s10, 1
      %p69 = por %p67, %p68
      %p70 = scmp.ne.s32.totalorder %s62, %s65
      %p71 = scmp.eq.s32.totalorder %s10, 0
      %p72 = por %p70, %p71
      %p73 = scmp.ne.s32.totalorder %s62, %s65
      %p74 = scmp.eq.s32.totalorder %s15, 1
      %p75 = por %p73, %p74
      %p76 = scmp.ne.s32.totalorder %s65, %s66
      %p77 = scmp.eq.s32.totalorder %s15, 0
      %p78 = por %p76, %p77
      %p79 = scmp.ne.s32.totalorder %s65, %s66
      %p80 = scmp.eq.s32.totalorder %s16, 1
      %p81 = por %p79, %p80
      %p83 = scmp.ne.s32.totalorder %s66, %s82
      %p84 = scmp.eq.s32.totalorder %s16, 0
      %p85 = por %p83, %p84
      %p86 = scmp.le.s32.totalorder 1, %s10
      %p87 = scmp.lt.s32.totalorder %s10, 3
      %p88 = pnand %p86, %p87
      %p89 = pneg %p88
      // Predicated region
      $region9: #{lcj_maxpool.1} parent=5 // pred_check
        _
      $region10: #{lcj_maxpool.1} parent=5 // pred_check_branch
        %91 = sbr.rel (%p88) target = $region12
      $region11: #{lcj_maxpool.1} parent=5 // pred_region
        %s92 = ssub.s32 %s10, 1
      $region12: #{lcj_maxpool.1} parent=5 // pred_fallthru
        _
      %p93 = scmp.lt.s32.totalorder %s10, 2
      // Predicated region
      $region13: #{lcj_maxpool.1} parent=5 // pred_check
        %p94 = pneg %p93
      $region14: #{lcj_maxpool.1} parent=5 // pred_check_branch
        %96 = sbr.rel (%p94) target = $region16
      $region15: #{lcj_maxpool.1} parent=5 // pred_region
        // Predicated region
        $region17: #{lcj_maxpool.1} parent=15 // pred_check
          %p97 = pneg %p44
        $region18: #{lcj_maxpool.1} parent=15 // pred_check_branch
          %99 = sbr.rel (%p97) target = $region20
        $region19: #{lcj_maxpool.1} parent=15 // pred_region
          %s100 = sand.u32 %s34, 1
          %s101 = scalar_lea.sflag [#allocation3], %s100
          %s102 = sand.u32 %s34, 1
          %s103 = smul.addr %s102, 64
          %s104 = scalar_lea.vmem [#allocation2], %s103
          %s105 = smul.u32 4, %s17
          %s106 = smul.u32 2, %s18
          %108 = vsyncadd %s101, 0
          %s109 = smul.addr %s105, 2
          %s110 = sadd.s32 %s106, %s109
          %s111 = smul.addr %s110, 8
          %s112 = scalar_lea.hbm %s0, %s111
          %s113 = sshll.u32 %s112, 4
          %s114 = int_to_ptr.hbm [resolvable:$true] %s113
          %s115 = sshll.u32 %s104, 4
          %s116 = int_to_ptr.vmem [resolvable:$true] %s115
          %121 = dma.hbm_to_vmem [thread:$0]  %s114, 1024, %s116, %s101, 128, 128, 8
        $region20: #{lcj_maxpool.1} parent=15 // pred_fallthru
          _
      $region16: #{lcj_maxpool.1} parent=5 // pred_fallthru
        _
      %p122 = scmp.le.s32.totalorder 1, %s10
      %p123 = scmp.lt.s32.totalorder %s10, 3
      %p124 = pnand %p122, %p123
      %p125 = pneg %p124
      // Predicated region
      $region21: #{lcj_maxpool.1} parent=5 // pred_check
        _
      $region22: #{lcj_maxpool.1} parent=5 // pred_check_branch
        %127 = sbr.rel (%p124) target = $region24
      $region23: #{lcj_maxpool.1} parent=5 // pred_region
        %s128 = ssub.s32 %s10, 1
        %s129 = sand.u32 %s37, 1
        %s130 = scalar_lea.sflag [#allocation3], %s129
        %s131 = sand.u32 %s37, 1
        %s132 = smul.addr %s131, 64
        %s133 = scalar_lea.vmem [#allocation2], %s132
        // Predicated region
        $region25: #{lcj_maxpool.1} parent=23 // pred_check
          %p134 = pneg %p50
        $region26: #{lcj_maxpool.1} parent=23 // pred_check_branch
          %136 = sbr.rel (%p134) target = $region28
        $region27: #{lcj_maxpool.1} parent=23 // pred_region
          %138 = dma.done %s130, 1024
        $region28: #{lcj_maxpool.1} parent=23 // pred_fallthru
          _
        %s139 = sand.u32 %s37, 1
        %s140 = scalar_lea.sflag [#allocation3], %s139
        %s141 = sand.u32 %s37, 1
        %s142 = smul.addr %s141, 64
        %s143 = scalar_lea.vmem [#allocation2], %s142
        %p144 = pneg %p50
        %p145 = pneg %p47
        %p146 = pneg %p78
        %p147 = pneg %p75
        %s148 = smul.u32 4, %s19
        %p149 = scmp.lt.s32.totalorder %s148, 7
        %s150 = scalar_select %p149, %s148, 7
        %p151 = scmp.lt.s32.totalorder %s20, 0
        %s152 = scalar_select %p151, %s20, 0
        %s153 = sadd.s32 %s152, %s150
        %s154 = smul.addr %s153, 8
        %s155 = scalar_lea.vmem %s1, %s154
        %s156 = smul.u32 4, %s19
        %s157 = smul.u32 2, %s20
        %s158 = smul.u32 4, %s19
        %p159 = scmp.lt.s32.totalorder %s158, 7
        %s160 = scalar_select %p159, %s158, 7
        %p161 = scmp.lt.s32.totalorder %s20, 0
        %s162 = scalar_select %p161, %s20, 0
        %s163 = sadd.s32 %s162, %s160
        %s164 = smul.addr %s163, 8
        %s165 = scalar_lea.vmem %s1, %s164
        %s166 = smul.u32 4, %s19
        %v167 = vlaneseq
        %v168 = vshrl.u32 %v167, 7
        %v169 = vadd.s32 %v168, 8
        %v170 = vlaneseq
        %v171 = vand.u32 %v170, 127
        %v172 = vmul.u32 %v171, 3
        %vm173 = vcmp.eq.s32.totalorder %v168, %v172
        %vm174 = vcmp.eq.s32.totalorder %v169, %v172
        %v175 = vsel %vm173, 1, 0
        %v176 = vsel %vm174, 1, 0
        %v177 = vcvt.s32.f32 %v175
        %v178 = vcvt.s32.f32 %v176
        loop: start=0, step=1, limit=4
        $region29: #{lcj_maxpool.1} parent=23 // loop_pre_header
          _
        $region30: #{lcj_maxpool.1} parent=23 // loop_header
          %s180 = sphi 0, %s184
          %p181 = scmp.ge.s32.totalorder %s180, 4
        $region31: #{lcj_maxpool.1} parent=23 // loop_header_branch
          %183 = sbr.rel (%p181) target = $region35
        $region32: #{lcj_maxpool.1} parent=23 // loop_body
          %s185 = smul.u32 %s180, 16
          %s186 = scalar_lea.vmem %s133, %s185 [#allocation2]
          %v187 = vld [vmem:[%s186] ss:$3 sm:$0x1f]
          %s188 = scalar_lea.vmem %s186, 1 [#allocation2]
          %v189 = vld [vmem:[%s188] ss:$3 sm:$0x1f]
          %s190 = scalar_lea.vmem %s186, 2 [#allocation2]
          %v191 = vld [vmem:[%s190] ss:$3 sm:$0x1f]
          %v192 = vmax.f32 %v187, %v189
          %v193 = vmax.f32 %v192, %v191
          %195 = vrot.lane.b32.xlu0 %v193, 127
          %v196 = vpop.permute.xlu0 %195
          %v198 = vmax.f32 %v193, %v196
          %199 = vrot.lane.b32.xlu0 %v193, 126
          %v200 = vpop.permute.xlu0 %199
          %v202 = vmax.f32 %v198, %v200
          %vm203 = vcmask 113664
          %v205 = vsel %vm203, %v202, 0
          %vm207 = vcmask 1045504
          %v209 = vsel %vm207, %v178, 0
          %211 = vmatpush.msra.mxu0 0.0
          %212 = vmatpush.msra.mxu0 0.0
          %213 = vmatpush.msra.mxu0 0.0
          %214 = vmatpush.msra.mxu0 0.0
          %215 = vmatpush.msra.mxu0 0.0
          %216 = vmatpush.msra.mxu0 0.0
          %217 = vmatpush.msra.mxu0 0.0
          %218 = vmatpush.msra.mxu0 0.0
          %219 = vmatpush.msra.mxu0 0.0
          %220 = vmatpush.msra.mxu0 0.0
          %221 = vmatpush.msra.mxu0 0.0
          %222 = vmatpush.msra.mxu0 0.0
          %223 = vmatpush.msra.mxu0 0.0
          %224 = vmatpush.msra.mxu0 0.0
          %v225 = vand.u32 %v209, 4294901760
          %226 = vmatpush.msra.mxu0 %v225
          %v227 = vand.u32 %v177, 4294901760
          %228 = vmatpush.msra.mxu0 %v227
          %v229 = vand.u32 %v205, 4294901760
          %v230 = vsub.f32 %v205, %v229
          %v231 = vand.u32 %v230, 4294901760
          %v232 = vsub.f32 %v230, %v231
          %v233 = vand.u32 %v232, 4294901760
          %234 = vmatmul.f32.gmra.mxu0 %v233
          %v235 = vpop.f32.mrf.mxu0
          %v236 = vadd.f32 0.0, %v235
          %237 = vdwg.mxu0
          %238 = vmatpush.msra.mxu0 0.0
          %239 = vmatpush.msra.mxu0 0.0
          %240 = vmatpush.msra.mxu0 0.0
          %241 = vmatpush.msra.mxu0 0.0
          %242 = vmatpush.msra.mxu0 0.0
          %243 = vmatpush.msra.mxu0 0.0
          %244 = vmatpush.msra.mxu0 0.0
          %245 = vmatpush.msra.mxu0 0.0
          %246 = vmatpush.msra.mxu0 0.0
          %247 = vmatpush.msra.mxu0 0.0
          %248 = vmatpush.msra.mxu0 0.0
          %249 = vmatpush.msra.mxu0 0.0
          %250 = vmatpush.msra.mxu0 0.0
          %251 = vmatpush.msra.mxu0 0.0
          %v252 = vand.u32 %v209, 4294901760
          %v253 = vsub.f32 %v209, %v252
          %v254 = vand.u32 %v253, 4294901760
          %v255 = vsub.f32 %v253, %v254
          %v256 = vand.u32 %v255, 4294901760
          %257 = vmatpush.msra.mxu0 %v256
          %v258 = vand.u32 %v177, 4294901760
          %v259 = vsub.f32 %v177, %v258
          %v260 = vand.u32 %v259, 4294901760
          %v261 = vsub.f32 %v259, %v260
          %v262 = vand.u32 %v261, 4294901760
          %263 = vmatpush.msra.mxu0 %v262
          %v264 = vand.u32 %v205, 4294901760
          %265 = vmatmul.f32.gmra.mxu0 %v264
          %v266 = vpop.f32.mrf.mxu0
          %v267 = vadd.f32 %v236, %v266
          %268 = vdwg.mxu0
          %269 = vmatpush.msra.mxu0 0.0
          %270 = vmatpush.msra.mxu0 0.0
          %271 = vmatpush.msra.mxu0 0.0
          %272 = vmatpush.msra.mxu0 0.0
          %273 = vmatpush.msra.mxu0 0.0
          %274 = vmatpush.msra.mxu0 0.0
          %275 = vmatpush.msra.mxu0 0.0
          %276 = vmatpush.msra.mxu0 0.0
          %277 = vmatpush.msra.mxu0 0.0
          %278 = vmatpush.msra.mxu0 0.0
          %279 = vmatpush.msra.mxu0 0.0
          %280 = vmatpush.msra.mxu0 0.0
          %281 = vmatpush.msra.mxu0 0.0
          %282 = vmatpush.msra.mxu0 0.0
          %v283 = vand.u32 %v209, 4294901760
          %v284 = vsub.f32 %v209, %v283
          %285 = vmatpush.msra.mxu0 %v284
          %v286 = vand.u32 %v177, 4294901760
          %v287 = vsub.f32 %v177, %v286
          %288 = vmatpush.msra.mxu0 %v287
          %v289 = vand.u32 %v205, 4294901760
          %v290 = vsub.f32 %v205, %v289
          %291 = vmatmul.f32.gmra.mxu0 %v290
          %v292 = vpop.f32.mrf.mxu0
          %v293 = vadd.f32 %v267, %v292
          %294 = vdwg.mxu0
          %295 = vmatpush.msra.mxu0 0.0
          %296 = vmatpush.msra.mxu0 0.0
          %297 = vmatpush.msra.mxu0 0.0
          %298 = vmatpush.msra.mxu0 0.0
          %299 = vmatpush.msra.mxu0 0.0
          %300 = vmatpush.msra.mxu0 0.0
          %301 = vmatpush.msra.mxu0 0.0
          %302 = vmatpush.msra.mxu0 0.0
          %303 = vmatpush.msra.mxu0 0.0
          %304 = vmatpush.msra.mxu0 0.0
          %305 = vmatpush.msra.mxu0 0.0
          %306 = vmatpush.msra.mxu0 0.0
          %307 = vmatpush.msra.mxu0 0.0
          %308 = vmatpush.msra.mxu0 0.0
          %v309 = vand.u32 %v209, 4294901760
          %310 = vmatpush.msra.mxu0 %v309
          %v311 = vand.u32 %v177, 4294901760
          %312 = vmatpush.msra.mxu0 %v311
          %v313 = vand.u32 %v205, 4294901760
          %v314 = vsub.f32 %v205, %v313
          %v315 = vand.u32 %v314, 4294901760
          %316 = vmatmul.f32.gmra.mxu0 %v315
          %v317 = vpop.f32.mrf.mxu0
          %v318 = vadd.f32 %v293, %v317
          %319 = vdwg.mxu0
          %320 = vmatpush.msra.mxu0 0.0
          %321 = vmatpush.msra.mxu0 0.0
          %322 = vmatpush.msra.mxu0 0.0
          %323 = vmatpush.msra.mxu0 0.0
          %324 = vmatpush.msra.mxu0 0.0
          %325 = vmatpush.msra.mxu0 0.0
          %326 = vmatpush.msra.mxu0 0.0
          %327 = vmatpush.msra.mxu0 0.0
          %328 = vmatpush.msra.mxu0 0.0
          %329 = vmatpush.msra.mxu0 0.0
          %330 = vmatpush.msra.mxu0 0.0
          %331 = vmatpush.msra.mxu0 0.0
          %332 = vmatpush.msra.mxu0 0.0
          %333 = vmatpush.msra.mxu0 0.0
          %v334 = vand.u32 %v209, 4294901760
          %v335 = vsub.f32 %v209, %v334
          %v336 = vand.u32 %v335, 4294901760
          %337 = vmatpush.msra.mxu0 %v336
          %v338 = vand.u32 %v177, 4294901760
          %v339 = vsub.f32 %v177, %v338
          %v340 = vand.u32 %v339, 4294901760
          %341 = vmatpush.msra.mxu0 %v340
          %v342 = vand.u32 %v205, 4294901760
          %343 = vmatmul.f32.gmra.mxu0 %v342
          %v344 = vpop.f32.mrf.mxu0
          %v345 = vadd.f32 %v318, %v344
          %346 = vdwg.mxu0
          %347 = vmatpush.msra.mxu0 0.0
          %348 = vmatpush.msra.mxu0 0.0
          %349 = vmatpush.msra.mxu0 0.0
          %350 = vmatpush.msra.mxu0 0.0
          %351 = vmatpush.msra.mxu0 0.0
          %352 = vmatpush.msra.mxu0 0.0
          %353 = vmatpush.msra.mxu0 0.0
          %354 = vmatpush.msra.mxu0 0.0
          %355 = vmatpush.msra.mxu0 0.0
          %356 = vmatpush.msra.mxu0 0.0
          %357 = vmatpush.msra.mxu0 0.0
          %358 = vmatpush.msra.mxu0 0.0
          %359 = vmatpush.msra.mxu0 0.0
          %360 = vmatpush.msra.mxu0 0.0
          %v361 = vand.u32 %v209, 4294901760
          %362 = vmatpush.msra.mxu0 %v361
          %v363 = vand.u32 %v177, 4294901760
          %364 = vmatpush.msra.mxu0 %v363
          %v365 = vand.u32 %v205, 4294901760
          %366 = vmatmul.f32.gmra.mxu0 %v365
          %v367 = vpop.f32.mrf.mxu0
          %v368 = vadd.f32 %v345, %v367
          %369 = vdwg.mxu0
          %s370 = smul.u32 %s180, 8
          %s371 = scalar_lea.vmem %s165, %s370
          %vm372 = vcmask 36864
          %373 = vst.msk [vmem:[%s371] sm:$0x1f] %vm372, %v368
        $region33: #{lcj_maxpool.1} parent=23 // loop_footer
          %s184 = sadd.s32 1, %s180
        $region34: #{lcj_maxpool.1} parent=23 // loop_footer_branch
          %179 = sbr.rel target = $region30
        $region35: #{lcj_maxpool.1} parent=23 // loop_exit
          _
        %s374 = smul.u32 4, %s19
        %p375 = scmp.lt.s32.totalorder %s374, 7
        %s376 = scalar_select %p375, %s374, 7
        %p377 = scmp.lt.s32.totalorder %s20, 0
        %s378 = scalar_select %p377, %s20, 0
        %s379 = sadd.s32 %s378, %s376
        %s380 = smul.addr %s379, 8
        %s381 = scalar_lea.vmem %s1, %s380
        // Predicated region
        $region36: #{lcj_maxpool.1} parent=23 // pred_check
          %p382 = pneg %p75
        $region37: #{lcj_maxpool.1} parent=23 // pred_check_branch
          %384 = sbr.rel (%p382) target = $region39
        $region38: #{lcj_maxpool.1} parent=23 // pred_region
          %s385 = smul.u32 4, %s19
        $region39: #{lcj_maxpool.1} parent=23 // pred_fallthru
          _
      $region24: #{lcj_maxpool.1} parent=5 // pred_fallthru
        _
      %p386 = scmp.le.s32.totalorder 2, %s10
      // Predicated region
      $region40: #{lcj_maxpool.1} parent=5 // pred_check
        %p387 = pneg %p386
      $region41: #{lcj_maxpool.1} parent=5 // pred_check_branch
        %389 = sbr.rel (%p387) target = $region43
      $region42: #{lcj_maxpool.1} parent=5 // pred_region
        %s390 = ssub.s32 %s10, 2
        // Predicated region
        $region44: #{lcj_maxpool.1} parent=42 // pred_check
          %p391 = pneg %p81
        $region45: #{lcj_maxpool.1} parent=42 // pred_check_branch
          %393 = sbr.rel (%p391) target = $region47
        $region46: #{lcj_maxpool.1} parent=42 // pred_region
          %s394 = smul.u32 4, %s21
          %p395 = scmp.lt.s32.totalorder %s394, 7
          %s396 = scalar_select %p395, %s394, 7
          %p397 = scmp.lt.s32.totalorder %s22, 0
          %s398 = scalar_select %p397, %s22, 0
          %s399 = sadd.s32 %s398, %s396
          %s400 = smul.addr %s399, 8
          %s401 = scalar_lea.vmem %s1, %s400
        $region47: #{lcj_maxpool.1} parent=42 // pred_fallthru
          _
      $region43: #{lcj_maxpool.1} parent=5 // pred_fallthru
        _
    $region6: #{lcj_maxpool.1} parent=1 // loop_footer
      %s14 = sadd.s32 1, %s10
    $region7: #{lcj_maxpool.1} parent=1 // loop_footer_branch
      %9 = sbr.rel target = $region3
    $region8: #{lcj_maxpool.1} parent=1 // loop_exit
      _
    %402 = vsyncpa [#allocation3], 1
    %s403 = scalar_lea.sflag [#allocation3], 1
    %404 = vsyncpa %s403, 1

</llo_original>
